<compile_context>
chip_gen: v6e
topology: v6e:2x2x1
jax: 0.10.0
libtpu: 0.0.40
codegen_flags: <defaults>
</compile_context>

<pallas_src>
import functools

import jax
import jax.numpy as jnp
from jax.experimental import pallas as pl
from jax.experimental.pallas import tpu as pltpu


def _make_divisible(v, divisor, min_value=None):
    if min_value is None:
        min_value = divisor
    new_v = max(min_value, int(v + divisor / 2) // divisor * divisor)
    if new_v < 0.9 * v:
        new_v += divisor
    return new_v


def _se_kernel(x_ref, w1_ref, b1_ref, w2_ref, b2_ref, o_ref, *, inv_hw, vpu_matmul):
    # x_ref: (B_blk, C, HW) in the I/O dtype
    # w1_ref: (C, Cr) f32 ; b1_ref: (1, Cr) f32
    # w2_ref: (Cr, C) f32 ; b2_ref: (1, C) f32
    x = x_ref[...]

    # Global average pool over the spatial axis.  Accumulate in f32 on the fly
    # (no block-sized f32 temporary).  inv_hw = 1 / (true H*W).
    pooled = jnp.sum(x, axis=-1, dtype=jnp.float32) * inv_hw          # (B_blk, C)

    w1 = w1_ref[...]
    b1 = b1_ref[...]
    w2 = w2_ref[...]
    b2 = b2_ref[...]

    if vpu_matmul:
        # Tiny C / Cr: unrolled broadcast-FMAs on the VPU; keeps the MXU pipe
        # and operand relayouts off the block's serial path.
        C, Cr = w1.shape
        s = b1 + pooled[:, 0:1] * w1[0:1, :]                          # (B_blk, Cr)
        for c in range(1, C):
            s = s + pooled[:, c:c + 1] * w1[c:c + 1, :]
        s = jnp.maximum(s, 0.0)
        e = b2 + s[:, 0:1] * w2[0:1, :]                               # (B_blk, C)
        for j in range(1, Cr):
            e = e + s[:, j:j + 1] * w2[j:j + 1, :]
    else:
        # conv_reduce / conv_expand as tiny MXU matmuls for larger channel counts.
        s = jnp.maximum(
            jnp.dot(pooled, w1, preferred_element_type=jnp.float32) + b1, 0.0)
        e = jnp.dot(s, w2, preferred_element_type=jnp.float32) + b2

    # hard_sigmoid: relu6(e + 3) / 6
    gate = jnp.clip(e + 3.0, 0.0, 6.0) * (1.0 / 6.0)                   # (B_blk, C)

    # Broadcast-multiply in the I/O dtype (bf16 multiply stays bf16 on the VPU).
    o_ref[...] = x * gate.astype(x.dtype)[:, :, None]


def squeeze_excite(x_nchw, w_reduce, b_reduce, w_expand, b_expand):
    """x_nchw: (N, C, H, W), any float dtype (kept for I/O).  Weights in PyTorch
       conv layout (minus trailing 1x1 dims): w_reduce: (Cr, C), b_reduce: (Cr,),
       w_expand: (C, Cr), b_expand: (C,)."""
    N, C, H, W = x_nchw.shape
    Cr = int(w_reduce.shape[0])
    HW = H * W
    dtype = x_nchw.dtype
    itemsize = jnp.dtype(dtype).itemsize
    MiB = 1024 * 1024

    # Free (contiguous) view only -- no pad / slice copies around the kernel.
    x = x_nchw.reshape(N, C, HW)

    # Tiny 1x1-conv weights, pre-transposed so the kernel computes
    # (B, C) @ (C, Cr) and (B, Cr) @ (Cr, C) directly.  Kept in f32.
    w1 = jnp.asarray(w_reduce, jnp.float32).reshape(Cr, C).T           # (C, Cr)
    b1 = jnp.asarray(b_reduce, jnp.float32).reshape(1, Cr)             # (1, Cr)
    w2 = jnp.asarray(w_expand, jnp.float32).reshape(C, Cr).T           # (Cr, C)
    b2 = jnp.asarray(b_expand, jnp.float32).reshape(1, C)              # (1, C)

    # Real VMEM footprint of one batch's (C, HW) plane: the last two dims tile
    # to sublane multiples of 8 (f32) / 16 (bf16) / 32 (int8) and lane multiples
    # of 128, so account for that padding explicitly.
    sublane = max(8, 32 // itemsize)
    c_pad = -(-C // sublane) * sublane
    hw_pad = -(-HW // 128) * 128
    vmem_per_batch = c_pad * hw_pad * itemsize

    # Per-generation block-size / VMEM targets, detected via VMEM capacity
    # (128 MiB => v5e/v6e; 64 MiB => v7x).  Conservative v7x-style defaults if
    # the query is unavailable.
    try:
        vmem_cap = int(getattr(pltpu.get_tpu_info(), "vmem_capacity_bytes",
                               64 * MiB))
    except Exception:  # pragma: no cover - fallback keeps the kernel runnable
        vmem_cap = 64 * MiB
    if vmem_cap >= 128 * MiB:            # v5e / v6e: 128 MiB physical per TC
        target_block_bytes = 12 * MiB
        vmem_ceiling = 96 * MiB
        min_steps = 3                    # pipelining depth on a single TC
    else:                                # v7x: 64 MiB per TC, 2 TCs per chip
        target_block_bytes = 6 * MiB
        vmem_ceiling = 52 * MiB
        min_steps = 4                    # >= 2 grid steps per TensorCore

    # Batches per grid step: sized by the padded VMEM footprint, hard-clamped so
    # double-buffered in+out blocks (4x) plus headroom fit the VMEM ceiling, and
    # kept small enough that multiple grid steps exist for pipelining / megacore.
    b_blk = max(1, min(N, target_block_bytes // max(1, vmem_per_batch)))
    max_by_vmem = (vmem_ceiling - 4 * MiB) // max(1, 4 * vmem_per_batch)
    b_blk = max(1, min(b_blk, max(1, max_by_vmem)))
    if N >= min_steps:
        b_blk = min(b_blk, max(1, N // min_steps))
    elif N >= 2:
        b_blk = min(b_blk, pl.cdiv(N, 2))
    grid_n = pl.cdiv(N, b_blk)

    vmem_limit = int(min(vmem_ceiling,
                         max(16 * MiB, 4 * b_blk * vmem_per_batch + 4 * MiB)))

    kernel = functools.partial(_se_kernel,
                               inv_hw=1.0 / float(HW),
                               vpu_matmul=(C <= 32 and Cr <= 32))

    out = pl.pallas_call(
        kernel,
        out_shape=jax.ShapeDtypeStruct((N, C, HW), dtype),
        grid=(grid_n,),
        in_specs=[
            pl.BlockSpec((b_blk, C, HW), lambda n: (n, 0, 0)),
            pl.BlockSpec((C, Cr), lambda n: (0, 0)),
            pl.BlockSpec((1, Cr), lambda n: (0, 0)),
            pl.BlockSpec((Cr, C), lambda n: (0, 0)),
            pl.BlockSpec((1, C), lambda n: (0, 0)),
        ],
        out_specs=pl.BlockSpec((b_blk, C, HW), lambda n: (n, 0, 0)),
        compiler_params=pltpu.CompilerParams(
            dimension_semantics=("parallel",),
            vmem_limit_bytes=vmem_limit,
        ),
    )(x, w1, b1, w2, b2)

    # Free view back to NCHW.
    return out.reshape(N, C, H, W)


def _reference(x, w1, b1, w2, b2):
    # Pure-JAX reference for sanity check (f32).
    xf = x.astype(jnp.float32)
    pooled = jnp.mean(xf, axis=(2, 3))                                 # (N, C)
    s = jnp.maximum(pooled @ w1.T + b1, 0.0)                           # (N, Cr)
    e = s @ w2.T + b2                                                  # (N, C)
    gate = jnp.clip(e + 3.0, 0.0, 6.0) / 6.0
    return xf * gate[:, :, None, None]


if __name__ == "__main__":
    # Module config: in_chs=4, se_ratio=0.25, divisor=4 -> reduced_chs=4
    in_chs = 4
    reduced_chs = _make_divisible(in_chs * 0.25, 4)                    # = 4

    key = jax.random.PRNGKey(0)
    kx, k1, k2, k3, k4 = jax.random.split(key, 5)

    N, C, H, W = 2, in_chs, 16, 16
    x = jax.random.normal(kx, (N, C, H, W), dtype=jnp.float32)

    # Deterministic synthetic parameters (PyTorch conv weight layout minus the
    # trailing 1x1 spatial dims).
    w_reduce = jax.random.normal(k1, (reduced_chs, in_chs), dtype=jnp.float32) * 0.2
    b_reduce = jax.random.normal(k2, (reduced_chs,), dtype=jnp.float32) * 0.1
    w_expand = jax.random.normal(k3, (in_chs, reduced_chs), dtype=jnp.float32) * 0.2
    b_expand = jax.random.normal(k4, (in_chs,), dtype=jnp.float32) * 0.1

    out = squeeze_excite(x, w_reduce, b_reduce, w_expand, b_expand)
    out = jax.block_until_ready(out)

    ref = _reference(x, w_reduce, b_reduce, w_expand, b_expand)
    assert out.shape == (N, C, H, W)
    assert jnp.allclose(out, ref, atol=1e-5, rtol=1e-5), "f32 mismatch vs reference"

    # bf16 I/O path (dtype is preserved end-to-end for HBM traffic).
    x_bf16 = x.astype(jnp.bfloat16)
    out_bf16 = jax.block_until_ready(
        squeeze_excite(x_bf16, w_reduce, b_reduce, w_expand, b_expand))
    assert out_bf16.dtype == jnp.bfloat16
    assert jnp.allclose(out_bf16.astype(jnp.float32), ref, atol=3e-2, rtol=3e-2), \
        "bf16 mismatch vs reference"

    print("KERNEL_OK")
</pallas_src>

<mosaic_0001>
module attributes {stable_mosaic.version = 11 : i64} {
  func.func @_se_kernel(%arg0: i32, %arg1: memref<1x4x256xf32, #tpu.memory_space<vmem>>, %arg2: memref<4x4xf32, #tpu.memory_space<vmem>>, %arg3: memref<1x4xf32, #tpu.memory_space<vmem>>, %arg4: memref<4x4xf32, #tpu.memory_space<vmem>>, %arg5: memref<1x4xf32, #tpu.memory_space<vmem>>, %arg6: memref<1x4x256xf32, #tpu.memory_space<vmem>>) attributes {dimension_semantics = [#tpu.dimension_semantics<parallel>], iteration_bounds = array<i64: 2>, scalar_prefetch = 0 : i64, scratch_operands = 0 : i64, tpu.core_type = #tpu.core_type<tc>, window_params = [{transform_indices = @transform_0, window_bounds = array<i64: 1, 4, 256>}, {pipeline_mode = #tpu.pipeline_mode<synchronous>, transform_indices = @transform_1, window_bounds = array<i64: 4, 4>}, {pipeline_mode = #tpu.pipeline_mode<synchronous>, transform_indices = @transform_2, window_bounds = array<i64: 1, 4>}, {pipeline_mode = #tpu.pipeline_mode<synchronous>, transform_indices = @transform_3, window_bounds = array<i64: 4, 4>}, {pipeline_mode = #tpu.pipeline_mode<synchronous>, transform_indices = @transform_4, window_bounds = array<i64: 1, 4>}, {transform_indices = @transform_5, window_bounds = array<i64: 1, 4, 256>}]} {
    %c0 = arith.constant 0 : index
    %c0_0 = arith.constant 0 : index
    %c0_1 = arith.constant 0 : index
    %0 = vector.load %arg1[%c0, %c0_0, %c0_1] : memref<1x4x256xf32, #tpu.memory_space<vmem>>, vector<1x4x256xf32>
    %cst = arith.constant dense<0.000000e+00> : vector<1x4xf32>
    %1 = vector.multi_reduction <add>, %0, %cst [2] : vector<1x4x256xf32> to vector<1x4xf32>
    %cst_2 = arith.constant 3.906250e-03 : f32
    %2 = vector.broadcast %cst_2 : f32 to vector<1x4xf32>
    %3 = arith.mulf %1, %2 : vector<1x4xf32>
    %c0_3 = arith.constant 0 : index
    %c0_4 = arith.constant 0 : index
    %4 = vector.load %arg2[%c0_3, %c0_4] : memref<4x4xf32, #tpu.memory_space<vmem>>, vector<4x4xf32>
    %c0_5 = arith.constant 0 : index
    %c0_6 = arith.constant 0 : index
    %5 = vector.load %arg3[%c0_5, %c0_6] : memref<1x4xf32, #tpu.memory_space<vmem>>, vector<1x4xf32>
    %c0_7 = arith.constant 0 : index
    %c0_8 = arith.constant 0 : index
    %6 = vector.load %arg4[%c0_7, %c0_8] : memref<4x4xf32, #tpu.memory_space<vmem>>, vector<4x4xf32>
    %c0_9 = arith.constant 0 : index
    %c0_10 = arith.constant 0 : index
    %7 = vector.load %arg5[%c0_9, %c0_10] : memref<1x4xf32, #tpu.memory_space<vmem>>, vector<1x4xf32>
    %8 = vector.extract_strided_slice %3 {offsets = [0, 0], sizes = [1, 1], strides = [1, 1]} : vector<1x4xf32> to vector<1x1xf32>
    %9 = vector.extract_strided_slice %4 {offsets = [0, 0], sizes = [1, 4], strides = [1, 1]} : vector<4x4xf32> to vector<1x4xf32>
    %10 = vector.broadcast %8 : vector<1x1xf32> to vector<1x4xf32>
    %11 = arith.mulf %10, %9 : vector<1x4xf32>
    %12 = arith.addf %5, %11 : vector<1x4xf32>
    %13 = vector.extract_strided_slice %3 {offsets = [0, 1], sizes = [1, 1], strides = [1, 1]} : vector<1x4xf32> to vector<1x1xf32>
    %14 = vector.extract_strided_slice %4 {offsets = [1, 0], sizes = [1, 4], strides = [1, 1]} : vector<4x4xf32> to vector<1x4xf32>
    %15 = vector.broadcast %13 : vector<1x1xf32> to vector<1x4xf32>
    %16 = arith.mulf %15, %14 : vector<1x4xf32>
    %17 = arith.addf %12, %16 : vector<1x4xf32>
    %18 = vector.extract_strided_slice %3 {offsets = [0, 2], sizes = [1, 1], strides = [1, 1]} : vector<1x4xf32> to vector<1x1xf32>
    %19 = vector.extract_strided_slice %4 {offsets = [2, 0], sizes = [1, 4], strides = [1, 1]} : vector<4x4xf32> to vector<1x4xf32>
    %20 = vector.broadcast %18 : vector<1x1xf32> to vector<1x4xf32>
    %21 = arith.mulf %20, %19 : vector<1x4xf32>
    %22 = arith.addf %17, %21 : vector<1x4xf32>
    %23 = vector.extract_strided_slice %3 {offsets = [0, 3], sizes = [1, 1], strides = [1, 1]} : vector<1x4xf32> to vector<1x1xf32>
    %24 = vector.extract_strided_slice %4 {offsets = [3, 0], sizes = [1, 4], strides = [1, 1]} : vector<4x4xf32> to vector<1x4xf32>
    %25 = vector.broadcast %23 : vector<1x1xf32> to vector<1x4xf32>
    %26 = arith.mulf %25, %24 : vector<1x4xf32>
    %27 = arith.addf %22, %26 : vector<1x4xf32>
    %cst_11 = arith.constant 0.000000e+00 : f32
    %28 = vector.broadcast %cst_11 : f32 to vector<1x4xf32>
    %29 = arith.maximumf %27, %28 : vector<1x4xf32>
    %30 = vector.extract_strided_slice %29 {offsets = [0, 0], sizes = [1, 1], strides = [1, 1]} : vector<1x4xf32> to vector<1x1xf32>
    %31 = vector.extract_strided_slice %6 {offsets = [0, 0], sizes = [1, 4], strides = [1, 1]} : vector<4x4xf32> to vector<1x4xf32>
    %32 = vector.broadcast %30 : vector<1x1xf32> to vector<1x4xf32>
    %33 = arith.mulf %32, %31 : vector<1x4xf32>
    %34 = arith.addf %7, %33 : vector<1x4xf32>
    %35 = vector.extract_strided_slice %29 {offsets = [0, 1], sizes = [1, 1], strides = [1, 1]} : vector<1x4xf32> to vector<1x1xf32>
    %36 = vector.extract_strided_slice %6 {offsets = [1, 0], sizes = [1, 4], strides = [1, 1]} : vector<4x4xf32> to vector<1x4xf32>
    %37 = vector.broadcast %35 : vector<1x1xf32> to vector<1x4xf32>
    %38 = arith.mulf %37, %36 : vector<1x4xf32>
    %39 = arith.addf %34, %38 : vector<1x4xf32>
    %40 = vector.extract_strided_slice %29 {offsets = [0, 2], sizes = [1, 1], strides = [1, 1]} : vector<1x4xf32> to vector<1x1xf32>
    %41 = vector.extract_strided_slice %6 {offsets = [2, 0], sizes = [1, 4], strides = [1, 1]} : vector<4x4xf32> to vector<1x4xf32>
    %42 = vector.broadcast %40 : vector<1x1xf32> to vector<1x4xf32>
    %43 = arith.mulf %42, %41 : vector<1x4xf32>
    %44 = arith.addf %39, %43 : vector<1x4xf32>
    %45 = vector.extract_strided_slice %29 {offsets = [0, 3], sizes = [1, 1], strides = [1, 1]} : vector<1x4xf32> to vector<1x1xf32>
    %46 = vector.extract_strided_slice %6 {offsets = [3, 0], sizes = [1, 4], strides = [1, 1]} : vector<4x4xf32> to vector<1x4xf32>
    %47 = vector.broadcast %45 : vector<1x1xf32> to vector<1x4xf32>
    %48 = arith.mulf %47, %46 : vector<1x4xf32>
    %49 = arith.addf %44, %48 : vector<1x4xf32>
    %cst_12 = arith.constant 3.000000e+00 : f32
    %50 = vector.broadcast %cst_12 : f32 to vector<1x4xf32>
    %51 = arith.addf %49, %50 : vector<1x4xf32>
    %cst_13 = arith.constant 0.000000e+00 : f32
    %cst_14 = arith.constant 6.000000e+00 : f32
    %52 = vector.broadcast %cst_13 : f32 to vector<1x4xf32>
    %53 = arith.maximumf %52, %51 : vector<1x4xf32>
    %54 = vector.broadcast %cst_14 : f32 to vector<1x4xf32>
    %55 = arith.minimumf %54, %53 : vector<1x4xf32>
    %cst_15 = arith.constant 0.166666672 : f32
    %56 = vector.broadcast %cst_15 : f32 to vector<1x4xf32>
    %57 = arith.mulf %55, %56 : vector<1x4xf32>
    %58 = vector.shape_cast %57 : vector<1x4xf32> to vector<1x4x1xf32>
    %59 = vector.broadcast %58 : vector<1x4x1xf32> to vector<1x4x256xf32>
    %60 = arith.mulf %0, %59 : vector<1x4x256xf32>
    %c0_16 = arith.constant 0 : index
    %c0_17 = arith.constant 0 : index
    %c0_18 = arith.constant 0 : index
    %61 = vector.load %arg6[%c0_16, %c0_17, %c0_18] : memref<1x4x256xf32, #tpu.memory_space<vmem>>, vector<1x4x256xf32>
    tpu.vector_store %arg6[%c0_16, %c0_17, %c0_18], %60 {strides = array<i32>} : memref<1x4x256xf32, #tpu.memory_space<vmem>>, vector<1x4x256xf32>,
    return
  }
  func.func @transform_0(%arg0: i32) -> (i32, i32, i32) {
    %c0_i32 = arith.constant 0 : i32
    %c0_i32_0 = arith.constant 0 : i32
    %c0_i32_1 = arith.constant 0 : i32
    return %arg0, %c0_i32, %c0_i32_0 : i32, i32, i32
  }
  func.func @transform_1(%arg0: i32) -> (i32, i32) {
    %c0_i32 = arith.constant 0 : i32
    %c0_i32_0 = arith.constant 0 : i32
    %c0_i32_1 = arith.constant 0 : i32
    return %c0_i32, %c0_i32_0 : i32, i32
  }
  func.func @transform_2(%arg0: i32) -> (i32, i32) {
    %c0_i32 = arith.constant 0 : i32
    %c0_i32_0 = arith.constant 0 : i32
    %c0_i32_1 = arith.constant 0 : i32
    return %c0_i32, %c0_i32_0 : i32, i32
  }
  func.func @transform_3(%arg0: i32) -> (i32, i32) {
    %c0_i32 = arith.constant 0 : i32
    %c0_i32_0 = arith.constant 0 : i32
    %c0_i32_1 = arith.constant 0 : i32
    return %c0_i32, %c0_i32_0 : i32, i32
  }
  func.func @transform_4(%arg0: i32) -> (i32, i32) {
    %c0_i32 = arith.constant 0 : i32
    %c0_i32_0 = arith.constant 0 : i32
    %c0_i32_1 = arith.constant 0 : i32
    return %c0_i32, %c0_i32_0 : i32, i32
  }
  func.func @transform_5(%arg0: i32) -> (i32, i32, i32) {
    %c0_i32 = arith.constant 0 : i32
    %c0_i32_0 = arith.constant 0 : i32
    %c0_i32_1 = arith.constant 0 : i32
    return %arg0, %c0_i32, %c0_i32_0 : i32, i32, i32
  }
}

</mosaic_0001>

<llo_original>
// kernel: tpu_custom_call.1
$region0: #{tpu_custom_call.1}
  #allocation0 [shape = 'u32[]', space=smem, size = 0x4, offset = 0x4, fixed_abs, tag = 'smem constant byte address 0x4 - core index']
  #allocation1 [shape = 'u32[144,128]{1,0:T(1,128)}', space=vmem, size = 0x12000, scoped, tag = 'internal scratch']
  %s0 = inlined_call_operand.hbm [shape: f32[2,4,256], index: 0, kind: input, shape index: {}]
  %s1 = inlined_call_operand.hbm [shape: f32[4,4], index: 1, kind: input, shape index: {}]
  %s2 = inlined_call_operand.vmem [shape: f32[1,4], index: 2, kind: input, shape index: {}]
  %s3 = inlined_call_operand.vmem [shape: f32[4,4], index: 3, kind: input, shape index: {}]
  %s4 = inlined_call_operand.vmem [shape: f32[1,4], index: 4, kind: input, shape index: {}]
  %s5 = inlined_call_operand.hbm [shape: f32[2,4,256], index: 5, kind: output, shape index: {}]
  %s6 = sld [smem:[#allocation0]]
  $region61: #{tpu_custom_call.1} parent=0
    _
  %s8 = ssub.s32 1, %s6
  %s9 = scalar_select 0, %s8, %s6
  $region1: #{tpu_custom_call.1} parent=0
    #allocation2 [shape = 'u8[8192]{0}', space=vmem, size = 0x2000, scoped, tag = 'input window, operand 0']
    #allocation3 [shape = 's32[2]{0}', space=sflag, size = 0x8, scoped, tag = 'scoped memory for tpu_custom_call.1']
    #allocation4 [shape = 's32[2]{0}', space=sflag, size = 0x8, scoped, tag = 'scoped memory for tpu_custom_call.1']
    #allocation5 [shape = 'u8[2048]{0}', space=vmem, size = 0x800, scoped, tag = 'input window, operand 1, single buffered']
    #allocation6 [shape = 's32[1]{0}', space=sflag, size = 0x4, scoped, tag = 'scoped memory for tpu_custom_call.1']
    #allocation7 [shape = 'u8[8192]{0}', space=vmem, size = 0x2000, scoped, tag = 'output window, operand 0']
    %10 = vsyncpa [#allocation3], 0
    %s11 = scalar_lea.sflag [#allocation3], 1
    %12 = vsyncpa %s11, 0
    %13 = vsyncpa [#allocation6], 0
    %14 = vsyncpa [#allocation4], 0
    %s15 = scalar_lea.sflag [#allocation4], 1
    %16 = vsyncpa %s15, 0
    loop: start=0, step=1, limit=4
    $region2: #{tpu_custom_call.1} parent=1 // loop_pre_header
      _
    $region3: #{tpu_custom_call.1} parent=1 // loop_header
      %s18 = sphi 0, %s22
      %p19 = scmp.ge.s32.totalorder %s18, 4
      %s28 = sphi 0, %s30
      %s31 = sphi 0, %s28
      %s32 = sphi 0, %s31
      %s48 = sphi 0, %s32
      %s52 = sphi 0, %s52
      %s54 = sphi 0, %s52
      %s55 = sphi 0, %s54
      %s69 = sphi 0, %s55
      %s73 = sphi 0, %s73
      %s75 = sphi 0, %s73
      %s76 = sphi 0, %s75
      %s90 = sphi 0, %s76
      %s94 = sphi 0, %s94
      %s96 = sphi 0, %s94
      %s97 = sphi 0, %s96
      %s111 = sphi 0, %s97
      %s115 = sphi 0, %s115
      %s117 = sphi 0, %s115
      %s118 = sphi 0, %s117
      %s132 = sphi 0, %s118
      %s138 = sphi 0, %s140
      %s141 = sphi 0, %s138
      %s142 = sphi 0, %s141
      %s158 = sphi 0, %s142
    $region4: #{tpu_custom_call.1} parent=1 // loop_header_branch
      %21 = sbr.rel (%p19) target = $region8
    $region5: #{tpu_custom_call.1} parent=1 // loop_body
      %s23 = ssub.s32 %s18, 1
      %s24 = ssub.s32 %s18, 2
      %s25 = sadd.s32 %s18, 1
      %s26 = ssub.s32 %s18, %s25
      %p27 = scmp.eq.s32.totalorder %s26, 0
      %s29 = sadd.s32 %s28, 1
      %s30 = scalar_select %p27, %s28, %s29
      %p33 = pneg %p27
      %p34 = scmp.eq.s32.totalorder %s18, 1
      %p35 = por %p33, %p34
      %p36 = scmp.ne.s32.totalorder %s28, %s31
      %p37 = scmp.eq.s32.totalorder %s18, 0
      %p38 = por %p36, %p37
      %p39 = scmp.ne.s32.totalorder %s28, %s31
      %p40 = scmp.eq.s32.totalorder %s23, 1
      %p41 = por %p39, %p40
      %p42 = scmp.ne.s32.totalorder %s31, %s32
      %p43 = scmp.eq.s32.totalorder %s23, 0
      %p44 = por %p42, %p43
      %p45 = scmp.ne.s32.totalorder %s31, %s32
      %p46 = scmp.eq.s32.totalorder %s24, 1
      %p47 = por %p45, %p46
      %p49 = scmp.ne.s32.totalorder %s32, %s48
      %p50 = scmp.eq.s32.totalorder %s24, 0
      %p51 = por %p49, %p50
      %s53 = sadd.s32 %s52, 1
      %p56 = scmp.eq.s32.totalorder %s18, 1
      %p57 = scmp.ne.s32.totalorder %s52, %s54
      %p58 = scmp.eq.s32.totalorder %s18, 0
      %p59 = por %p57, %p58
      %p60 = scmp.ne.s32.totalorder %s52, %s54
      %p61 = scmp.eq.s32.totalorder %s23, 1
      %p62 = por %p60, %p61
      %p63 = scmp.ne.s32.totalorder %s54, %s55
      %p64 = scmp.eq.s32.totalorder %s23, 0
      %p65 = por %p63, %p64
      %p66 = scmp.ne.s32.totalorder %s54, %s55
      %p67 = scmp.eq.s32.totalorder %s24, 1
      %p68 = por %p66, %p67
      %p70 = scmp.ne.s32.totalorder %s55, %s69
      %p71 = scmp.eq.s32.totalorder %s24, 0
      %p72 = por %p70, %p71
      %s74 = sadd.s32 %s73, 1
      %p77 = scmp.eq.s32.totalorder %s18, 1
      %p78 = scmp.ne.s32.totalorder %s73, %s75
      %p79 = scmp.eq.s32.totalorder %s18, 0
      %p80 = por %p78, %p79
      %p81 = scmp.ne.s32.totalorder %s73, %s75
      %p82 = scmp.eq.s32.totalorder %s23, 1
      %p83 = por %p81, %p82
      %p84 = scmp.ne.s32.totalorder %s75, %s76
      %p85 = scmp.eq.s32.totalorder %s23, 0
      %p86 = por %p84, %p85
      %p87 = scmp.ne.s32.totalorder %s75, %s76
      %p88 = scmp.eq.s32.totalorder %s24, 1
      %p89 = por %p87, %p88
      %p91 = scmp.ne.s32.totalorder %s76, %s90
      %p92 = scmp.eq.s32.totalorder %s24, 0
      %p93 = por %p91, %p92
      %s95 = sadd.s32 %s94, 1
      %p98 = scmp.eq.s32.totalorder %s18, 1
      %p99 = scmp.ne.s32.totalorder %s94, %s96
      %p100 = scmp.eq.s32.totalorder %s18, 0
      %p101 = por %p99, %p100
      %p102 = scmp.ne.s32.totalorder %s94, %s96
      %p103 = scmp.eq.s32.totalorder %s23, 1
      %p104 = por %p102, %p103
      %p105 = scmp.ne.s32.totalorder %s96, %s97
      %p106 = scmp.eq.s32.totalorder %s23, 0
      %p107 = por %p105, %p106
      %p108 = scmp.ne.s32.totalorder %s96, %s97
      %p109 = scmp.eq.s32.totalorder %s24, 1
      %p110 = por %p108, %p109
      %p112 = scmp.ne.s32.totalorder %s97, %s111
      %p113 = scmp.eq.s32.totalorder %s24, 0
      %p114 = por %p112, %p113
      %s116 = sadd.s32 %s115, 1
      %p119 = scmp.eq.s32.totalorder %s18, 1
      %p120 = scmp.ne.s32.totalorder %s115, %s117
      %p121 = scmp.eq.s32.totalorder %s18, 0
      %p122 = por %p120, %p121
      %p123 = scmp.ne.s32.totalorder %s115, %s117
      %p124 = scmp.eq.s32.totalorder %s23, 1
      %p125 = por %p123, %p124
      %p126 = scmp.ne.s32.totalorder %s117, %s118
      %p127 = scmp.eq.s32.totalorder %s23, 0
      %p128 = por %p126, %p127
      %p129 = scmp.ne.s32.totalorder %s117, %s118
      %p130 = scmp.eq.s32.totalorder %s24, 1
      %p131 = por %p129, %p130
      %p133 = scmp.ne.s32.totalorder %s118, %s132
      %p134 = scmp.eq.s32.totalorder %s24, 0
      %p135 = por %p133, %p134
      %s136 = ssub.s32 %s18, %s25
      %p137 = scmp.eq.s32.totalorder %s136, 0
      %s139 = sadd.s32 %s138, 1
      %s140 = scalar_select %p137, %s138, %s139
      %p143 = pneg %p137
      %p144 = scmp.eq.s32.totalorder %s18, 1
      %p145 = por %p143, %p144
      %p146 = scmp.ne.s32.totalorder %s138, %s141
      %p147 = scmp.eq.s32.totalorder %s18, 0
      %p148 = por %p146, %p147
      %p149 = scmp.ne.s32.totalorder %s138, %s141
      %p150 = scmp.eq.s32.totalorder %s23, 1
      %p151 = por %p149, %p150
      %p152 = scmp.ne.s32.totalorder %s141, %s142
      %p153 = scmp.eq.s32.totalorder %s23, 0
      %p154 = por %p152, %p153
      %p155 = scmp.ne.s32.totalorder %s141, %s142
      %p156 = scmp.eq.s32.totalorder %s24, 1
      %p157 = por %p155, %p156
      %p159 = scmp.ne.s32.totalorder %s142, %s158
      %p160 = scmp.eq.s32.totalorder %s24, 0
      %p161 = por %p159, %p160
      %p162 = scmp.le.s32.totalorder 1, %s18
      %p163 = scmp.lt.s32.totalorder %s18, 3
      %p164 = pnand %p162, %p163
      %p165 = pneg %p164
      // Predicated region
      $region9: #{tpu_custom_call.1} parent=5 // pred_check
        _
      $region10: #{tpu_custom_call.1} parent=5 // pred_check_branch
        %167 = sbr.rel (%p164) target = $region12
      $region11: #{tpu_custom_call.1} parent=5 // pred_region
        %s168 = ssub.s32 %s18, 1
        // Predicated region
        $region13: #{tpu_custom_call.1} parent=11 // pred_check
          %p169 = pneg %p65
        $region14: #{tpu_custom_call.1} parent=11 // pred_check_branch
          %171 = sbr.rel (%p169) target = $region16
        $region15: #{tpu_custom_call.1} parent=11 // pred_region
          %s173 = ssub.s32 64, 64
          %174 = vsyncadd [#allocation6], %s173
          %s176 = sshll.u32 [#allocation5], 4
          %s177 = int_to_ptr.vmem [resolvable:$true] %s176
          %179 = dma.hbm_to_vmem [thread:$0]  %s1, 64, %s177, [#allocation6]
        $region16: #{tpu_custom_call.1} parent=11 // pred_fallthru
          _
        // Predicated region
        $region17: #{tpu_custom_call.1} parent=11 // pred_check
          %p180 = pneg %p86
        $region18: #{tpu_custom_call.1} parent=11 // pred_check_branch
          %182 = sbr.rel (%p180) target = $region20
        $region19: #{tpu_custom_call.1} parent=11 // pred_region
          _
        $region20: #{tpu_custom_call.1} parent=11 // pred_fallthru
          _
        // Predicated region
        $region21: #{tpu_custom_call.1} parent=11 // pred_check
          %p183 = pneg %p107
        $region22: #{tpu_custom_call.1} parent=11 // pred_check_branch
          %185 = sbr.rel (%p183) target = $region24
        $region23: #{tpu_custom_call.1} parent=11 // pred_region
          _
        $region24: #{tpu_custom_call.1} parent=11 // pred_fallthru
          _
        // Predicated region
        $region25: #{tpu_custom_call.1} parent=11 // pred_check
          %p186 = pneg %p128
        $region26: #{tpu_custom_call.1} parent=11 // pred_check_branch
          %188 = sbr.rel (%p186) target = $region28
        $region27: #{tpu_custom_call.1} parent=11 // pred_region
          _
        $region28: #{tpu_custom_call.1} parent=11 // pred_fallthru
          _
      $region12: #{tpu_custom_call.1} parent=5 // pred_fallthru
        _
      %p189 = scmp.lt.s32.totalorder %s18, 2
      // Predicated region
      $region29: #{tpu_custom_call.1} parent=5 // pred_check
        %p190 = pneg %p189
      $region30: #{tpu_custom_call.1} parent=5 // pred_check_branch
        %192 = sbr.rel (%p190) target = $region32
      $region31: #{tpu_custom_call.1} parent=5 // pred_region
        // Predicated region
        $region33: #{tpu_custom_call.1} parent=31 // pred_check
          %p193 = pneg %p38
        $region34: #{tpu_custom_call.1} parent=31 // pred_check_branch
          %195 = sbr.rel (%p193) target = $region36
        $region35: #{tpu_custom_call.1} parent=31 // pred_region
          %s196 = sand.u32 %s28, 1
          %s197 = scalar_lea.sflag [#allocation3], %s196
          %s198 = sand.u32 %s28, 1
          %s199 = smul.addr %s198, 8
          %s200 = scalar_lea.vmem [#allocation2], %s199
          %s202 = ssub.s32 128, 128
          %203 = vsyncadd %s197, %s202
          %s204 = smul.addr %s18, 2
          %s205 = smul.addr %s204, 64
          %s206 = scalar_lea.hbm %s0, %s205
          %s208 = sshll.u32 %s200, 4
          %s209 = int_to_ptr.vmem [resolvable:$true] %s208
          %211 = dma.hbm_to_vmem [thread:$0]  %s206, 128, %s209, %s197
        $region36: #{tpu_custom_call.1} parent=31 // pred_fallthru
          _
      $region32: #{tpu_custom_call.1} parent=5 // pred_fallthru
        _
      %p212 = scmp.le.s32.totalorder 1, %s18
      %p213 = scmp.lt.s32.totalorder %s18, 3
      %p214 = pnand %p212, %p213
      %p215 = pneg %p214
      // Predicated region
      $region37: #{tpu_custom_call.1} parent=5 // pred_check
        _
      $region38: #{tpu_custom_call.1} parent=5 // pred_check_branch
        %217 = sbr.rel (%p214) target = $region40
      $region39: #{tpu_custom_call.1} parent=5 // pred_region
        %s218 = ssub.s32 %s18, 1
        %s219 = sand.u32 %s31, 1
        %s220 = scalar_lea.sflag [#allocation3], %s219
        %s221 = sand.u32 %s31, 1
        %s222 = smul.addr %s221, 8
        %s223 = scalar_lea.vmem [#allocation2], %s222
        // Predicated region
        $region41: #{tpu_custom_call.1} parent=39 // pred_check
          %p224 = pneg %p44
        $region42: #{tpu_custom_call.1} parent=39 // pred_check_branch
          %226 = sbr.rel (%p224) target = $region44
        $region43: #{tpu_custom_call.1} parent=39 // pred_region
          %227 = dma.done %s220, 128
        $region44: #{tpu_custom_call.1} parent=39 // pred_fallthru
          _
        // Predicated region
        $region45: #{tpu_custom_call.1} parent=39 // pred_check
          %p228 = pneg %p65
        $region46: #{tpu_custom_call.1} parent=39 // pred_check_branch
          %230 = sbr.rel (%p228) target = $region48
        $region47: #{tpu_custom_call.1} parent=39 // pred_region
          %231 = dma.done [#allocation6], 64
        $region48: #{tpu_custom_call.1} parent=39 // pred_fallthru
          _
        %s232 = sand.u32 %s31, 1
        %s233 = scalar_lea.sflag [#allocation3], %s232
        %s234 = sand.u32 %s31, 1
        %s235 = smul.addr %s234, 8
        %s236 = scalar_lea.vmem [#allocation2], %s235
        %p237 = pneg %p44
        %p238 = pneg %p41
        %p239 = pneg %p65
        %p240 = pneg %p62
        %p241 = pneg %p86
        %p242 = pneg %p83
        %p243 = pneg %p107
        %p244 = pneg %p104
        %p245 = pneg %p128
        %p246 = pneg %p125
        %p247 = pneg %p154
        %p248 = pneg %p151
        %s249 = sand.u32 %s141, 1
        %s250 = scalar_lea.sflag [#allocation4], %s249
        %s251 = sand.u32 %s141, 1
        %s252 = smul.addr %s251, 8
        %s253 = scalar_lea.vmem [#allocation7], %s252
        %v254 = vld [vmem:[%s223] sm:$0xff]
        %v256 = vcombine.high %v254, %v254
        %vm258 = vcmask 1043456
        %v259 = vsel %vm258, %v254, 0.0
        %v260 = vsel %vm258, %v256, 0.0
        %v261 = vadd.f32 %v259, %v260
        %262 = vadd.xlane.f32.xlu0 %v261
        %v263 = vpop.xlane.xlu0 %262
        %v264 = vmul.f32 %v263, 0.00390625
        %v265 = vld [vmem:[#allocation5] sm:$0xf]
        %v266 = vld [vmem:[%s2] sm:$0x1]
        %v267 = vld [vmem:[%s3] sm:$0xf]
        %v268 = vld [vmem:[%s4] sm:$0x1]
        %v269 = vmul.f32 %v264, %v265
        %v270 = vadd.f32 %v266, %v269
        %v273 = vunpack.c.l.s4 1966171168
        %v274 = vunpack.c.0.s8 %v273
        %v275 = vlaneseq
        %v276 = vshrl.u32 %v275, 7
        %v277 = vsub.s32 %v274, %v276
        %v278 = vrot.slane %v269, %v277
        %v279 = vcombine.high %v278, %v278
        %v281 = vunpack.c.l.s4 1966171168
        %v282 = vunpack.c.0.s8 %v281
        %v283 = vlaneseq
        %v284 = vshrl.u32 %v283, 7
        %v285 = vsub.s32 %v282, %v284
        %v286 = vrot.slane %v278, %v285
        %v288 = vunpack.c.l.s4 1966171168
        %v289 = vunpack.c.0.s8 %v288
        %v290 = vlaneseq
        %v291 = vshrl.u32 %v290, 7
        %v292 = vsub.s32 %v289, %v291
        %v293 = vrot.slane %v279, %v292
        %v295 = vadd.f32 %v270, %v293
        %v296 = vcombine.high %v286, %v286
        %v298 = vadd.f32 %v295, %v296
        %v299 = vcombine.high %v293, %v293
        %v301 = vadd.f32 %v298, %v299
        %v302 = vmax.f32 %v301, 0.0
        %304 = vset.pattern.permute.xlu0 0
        %305 = vperm.xlu0 %304, %v302
        %v306 = vpop.permute.xlu0 %305
        %v308 = vlaneseq
        %v309 = vshrl.u32 %v308, 7
        %v310 = vsub.s32 0, %v309
        %v311 = vrot.slane %v306, %v310
        %v312 = vmul.f32 %v311, %v267
        %v313 = vadd.f32 %v268, %v312
        %314 = vset.pattern.permute.xlu0 1
        %315 = vperm.xlu0 %314, %v302
        %v316 = vpop.permute.xlu0 %315
        %v318 = vlaneseq
        %v319 = vshrl.u32 %v318, 7
        %v320 = vsub.s32 0, %v319
        %v321 = vrot.slane %v316, %v320
        %v322 = vmul.f32 %v321, %v267
        %v325 = vunpack.c.l.s4 1966171168
        %v326 = vunpack.c.0.s8 %v325
        %v327 = vlaneseq
        %v328 = vshrl.u32 %v327, 7
        %v329 = vsub.s32 %v326, %v328
        %v330 = vrot.slane %v322, %v329
        %v331 = vcombine.high %v330, %v330
        %v333 = vunpack.c.l.s4 1966171168
        %v334 = vunpack.c.0.s8 %v333
        %v335 = vlaneseq
        %v336 = vshrl.u32 %v335, 7
        %v337 = vsub.s32 %v334, %v336
        %v338 = vrot.slane %v331, %v337
        %v340 = vadd.f32 %v313, %v338
        %341 = vset.pattern.permute.xlu0 2
        %342 = vperm.xlu0 %341, %v302
        %v343 = vpop.permute.xlu0 %342
        %v345 = vlaneseq
        %v346 = vshrl.u32 %v345, 7
        %v347 = vsub.s32 0, %v346
        %v348 = vrot.slane %v343, %v347
        %v349 = vmul.f32 %v348, %v267
        %v352 = vunpack.c.l.s4 1966171168
        %v353 = vunpack.c.0.s8 %v352
        %v354 = vlaneseq
        %v355 = vshrl.u32 %v354, 7
        %v356 = vsub.s32 %v353, %v355
        %v357 = vrot.slane %v349, %v356
        %v359 = vunpack.c.l.s4 1966171168
        %v360 = vunpack.c.0.s8 %v359
        %v361 = vlaneseq
        %v362 = vshrl.u32 %v361, 7
        %v363 = vsub.s32 %v360, %v362
        %v364 = vrot.slane %v357, %v363
        %v365 = vcombine.high %v364, %v364
        %v367 = vadd.f32 %v340, %v365
        %368 = vset.pattern.permute.xlu0 3
        %369 = vperm.xlu0 %368, %v302
        %v370 = vpop.permute.xlu0 %369
        %v372 = vlaneseq
        %v373 = vshrl.u32 %v372, 7
        %v374 = vsub.s32 0, %v373
        %v375 = vrot.slane %v370, %v374
        %v376 = vmul.f32 %v375, %v267
        %v379 = vunpack.c.l.s4 1966171168
        %v380 = vunpack.c.0.s8 %v379
        %v381 = vlaneseq
        %v382 = vshrl.u32 %v381, 7
        %v383 = vsub.s32 %v380, %v382
        %v384 = vrot.slane %v376, %v383
        %v385 = vcombine.high %v384, %v384
        %v387 = vunpack.c.l.s4 1966171168
        %v388 = vunpack.c.0.s8 %v387
        %v389 = vlaneseq
        %v390 = vshrl.u32 %v389, 7
        %v391 = vsub.s32 %v388, %v390
        %v392 = vrot.slane %v385, %v391
        %v393 = vcombine.high %v392, %v392
        %v395 = vadd.f32 %v367, %v393
        %v396 = vadd.f32 %v395, 3.0
        %v397 = vmax.f32 %v396, 0.0
        %v398 = vmin.f32 %v397, 6.0
        %v399 = vmul.f32 %v398, 0.16666667
        %v400 = vlaneseq
        %v401 = vshrl.u32 %v400, 7
        %v402 = vsub.s32 0, %v401
        %v403 = vrot.slane %v399, %v402
        %405 = vbcast.lane.b32.xlu0 %v403, 256
        %v406 = vpop.permute.xlu0 %405
        %v409 = vunpack.c.l.s4 839922192
        %v410 = vunpack.c.0.s8 %v409
        %v411 = vlaneseq
        %v412 = vshrl.u32 %v411, 7
        %v413 = vsub.s32 %v410, %v412
        %v414 = vrot.slane %v406, %v413
        %v416 = vmul.f32 %v254, %v414
        %417 = vst [vmem:[%s253] sm:$0xff] %v416
        %s418 = sand.u32 %s141, 1
        %s419 = scalar_lea.sflag [#allocation4], %s418
        %s420 = sand.u32 %s141, 1
        %s421 = smul.addr %s420, 8
        %s422 = scalar_lea.vmem [#allocation7], %s421
        // Predicated region
        $region49: #{tpu_custom_call.1} parent=39 // pred_check
          %p423 = pneg %p151
        $region50: #{tpu_custom_call.1} parent=39 // pred_check_branch
          %425 = sbr.rel (%p423) target = $region52
        $region51: #{tpu_custom_call.1} parent=39 // pred_region
          %s427 = ssub.s32 128, 128
          %428 = vsyncadd %s419, %s427
          %s429 = smul.addr %s23, 2
          %s430 = smul.addr %s429, 64
          %s431 = scalar_lea.hbm %s5, %s430
          %s433 = sshll.u32 %s422, 4
          %s434 = int_to_ptr.vmem [resolvable:$true] %s433
          %436 = dma.vmem_to_hbm [thread:$0]  %s434, 128, %s431, %s419
        $region52: #{tpu_custom_call.1} parent=39 // pred_fallthru
          _
      $region40: #{tpu_custom_call.1} parent=5 // pred_fallthru
        _
      %p437 = scmp.le.s32.totalorder 2, %s18
      // Predicated region
      $region53: #{tpu_custom_call.1} parent=5 // pred_check
        %p438 = pneg %p437
      $region54: #{tpu_custom_call.1} parent=5 // pred_check_branch
        %440 = sbr.rel (%p438) target = $region56
      $region55: #{tpu_custom_call.1} parent=5 // pred_region
        %s441 = ssub.s32 %s18, 2
        // Predicated region
        $region57: #{tpu_custom_call.1} parent=55 // pred_check
          %p442 = pneg %p157
        $region58: #{tpu_custom_call.1} parent=55 // pred_check_branch
          %444 = sbr.rel (%p442) target = $region60
        $region59: #{tpu_custom_call.1} parent=55 // pred_region
          %s445 = sand.u32 %s142, 1
          %s446 = scalar_lea.sflag [#allocation4], %s445
          %s447 = sand.u32 %s142, 1
          %s448 = smul.addr %s447, 8
          %s449 = scalar_lea.vmem [#allocation7], %s448
          %450 = dma.done %s446, 128
        $region60: #{tpu_custom_call.1} parent=55 // pred_fallthru
          _
      $region56: #{tpu_custom_call.1} parent=5 // pred_fallthru
        _
    $region6: #{tpu_custom_call.1} parent=1 // loop_footer
      %s22 = sadd.s32 1, %s18
    $region7: #{tpu_custom_call.1} parent=1 // loop_footer_branch
      %17 = sbr.rel target = $region3
    $region8: #{tpu_custom_call.1} parent=1 // loop_exit
      _
    %451 = vsyncpa [#allocation3], 1
    %s452 = scalar_lea.sflag [#allocation3], 1
    %453 = vsyncpa %s452, 1
    %454 = vsyncpa [#allocation6], 1
    %455 = vsyncpa [#allocation4], 1
    %s456 = scalar_lea.sflag [#allocation4], 1
    %457 = vsyncpa %s456, 1

</llo_original>
